<compile_context>
chip_gen: v6e
topology: v6e:2x2x1
jax: 0.10.0
libtpu: 0.0.40
codegen_flags: <defaults>
</compile_context>

<pallas_src>
import math
import functools

import jax
import jax.numpy as jnp
from jax import lax
from jax.experimental import pallas as pl
from jax.experimental.pallas import tpu as pltpu


def _mha_head_kernel(q_ref, k_ref, v_ref,
                     wq_ref, bq_ref, wk_ref, bk_ref, wv_ref, bv_ref,
                     wo_ref, bo_ref,
                     out_ref,
                     *, d_k: int, mxu_dtype):
    """One grid step = (batch b, head h): project, attend, and accumulate the
    head's contribution to the output projection for batch b."""
    h = pl.program_id(1)
    scale = 1.0 / math.sqrt(d_k)

    # Output block index is constant over h -> out_ref is a VMEM-resident
    # f32 accumulator for the whole head reduction.  Seed it with the output
    # bias on the first head.
    @pl.when(h == 0)
    def _init():
        out_ref[...] = jnp.broadcast_to(bo_ref[...], out_ref.shape).astype(out_ref.dtype)

    # Activations for batch b (cast is a no-op on the f32-MXU path).
    x_q = q_ref[0].astype(mxu_dtype)          # (S, D)
    x_k = k_ref[0].astype(mxu_dtype)
    x_v = v_ref[0].astype(mxu_dtype)

    # Per-head weight slices, pre-cast to mxu_dtype in the wrapper.
    wq = wq_ref[0]                            # (D, d_k)
    wk = wk_ref[0]
    wv = wv_ref[0]
    wo = wo_ref[0]                            # (d_k, D)

    # Input projections for this head only: (S, D) @ (D, d_k), f32 accumulate.
    q_h = jnp.dot(x_q, wq, preferred_element_type=jnp.float32) + bq_ref[0]   # (S, d_k)
    k_h = jnp.dot(x_k, wk, preferred_element_type=jnp.float32) + bk_ref[0]
    v_h = jnp.dot(x_v, wv, preferred_element_type=jnp.float32) + bv_ref[0]

    # Fold 1/sqrt(d_k) into q: S*d_k multiplies instead of S*S on the scores.
    q_h = q_h * scale

    # Scores contract on the last dim of both operands -> no explicit K
    # transpose (MXU consumes K directly, no XLU vxpose round-trip).
    scores = lax.dot_general(q_h.astype(mxu_dtype), k_h.astype(mxu_dtype),
                             (((1,), (1,)), ((), ())),
                             preferred_element_type=jnp.float32)             # (S, S)

    # TODO(synk): self.mask is None in this configuration; masked_fill skipped.
    m = jnp.max(scores, axis=-1, keepdims=True)
    e = jnp.exp(scores - m)
    attn = e * pl.reciprocal(jnp.sum(e, axis=-1, keepdims=True), approx=True)
    # TODO(synk): nn.Dropout on attention weights treated as identity
    # (eval-mode semantics); matching torch's RNG stream is not meaningful.

    ctx = jnp.dot(attn.astype(mxu_dtype), v_h.astype(mxu_dtype),
                  preferred_element_type=jnp.float32)                        # (S, d_k)

    # Head merge folded into the output projection: accumulate this head's
    # contribution ctx_h @ Wo_h into the resident output block (MXU + f32 add,
    # no masked partial stores, no scratch slab).
    out_ref[0] += jnp.dot(ctx.astype(mxu_dtype), wo,
                          preferred_element_type=jnp.float32).astype(out_ref.dtype)


def _prep_params(params, num_heads: int, mxu_dtype):
    """Reshape weights into per-head stacks and pre-cast them to the MXU dtype
    ONCE (outside the kernel).  Biases stay f32 (added on the VPU)."""
    D = params["wq"].shape[0]
    d_k = D // num_heads

    def head_cols(w):   # (D, D) -> (H, D, d_k): column slice per head
        return w.reshape(D, num_heads, d_k).transpose(1, 0, 2).astype(mxu_dtype)

    def head_rows(w):   # (D, D) -> (H, d_k, D): row slice per head
        return w.reshape(num_heads, d_k, D).astype(mxu_dtype)

    def head_bias(b):   # (D,) -> (H, 1, d_k)
        return b.reshape(num_heads, 1, d_k).astype(jnp.float32)

    return dict(
        wq=head_cols(params["wq"]), bq=head_bias(params["bq"]),
        wk=head_cols(params["wk"]), bk=head_bias(params["bk"]),
        wv=head_cols(params["wv"]), bv=head_bias(params["bv"]),
        wo=head_rows(params["wo"]), bo=params["bo"].reshape(1, 1, D).astype(jnp.float32),
    )


def multihead_attention_v2(q_enc, k_enc, v_enc, params, *, num_heads: int,
                           mxu_dtype=jnp.bfloat16):
    """q_enc/k_enc/v_enc: (B, S, D) float32.  params: (D, D) weights, (D,) biases.

    mxu_dtype controls only the MXU operand precision (default bf16 on all TPU
    generations); bias adds / softmax / accumulation stay f32.
    """
    B, S, D = q_enc.shape
    assert D % num_heads == 0
    d_k = D // num_heads
    H = num_heads

    p = _prep_params(params, num_heads, mxu_dtype)

    act_spec = pl.BlockSpec((1, S, D), lambda b, h: (b, 0, 0))       # per-batch block
    w_in_spec = pl.BlockSpec((1, D, d_k), lambda b, h: (h, 0, 0))    # per-head W_{q,k,v}
    b_in_spec = pl.BlockSpec((1, 1, d_k), lambda b, h: (h, 0, 0))    # per-head bias
    wo_spec = pl.BlockSpec((1, d_k, D), lambda b, h: (h, 0, 0))      # per-head W_o rows
    bo_spec = pl.BlockSpec((1, 1, D), lambda b, h: (0, 0, 0))        # shared output bias
    out_spec = pl.BlockSpec((1, S, D), lambda b, h: (b, 0, 0))       # constant over h

    kernel = functools.partial(_mha_head_kernel, d_k=d_k, mxu_dtype=mxu_dtype)

    out = pl.pallas_call(
        kernel,
        out_shape=jax.ShapeDtypeStruct((B, S, D), q_enc.dtype),
        grid_spec=pltpu.PrefetchScalarGridSpec(
            num_scalar_prefetch=0,
            grid=(B, H),  # batch parallel (both v7x TCs), head reduction last
            in_specs=[act_spec, act_spec, act_spec,
                      w_in_spec, b_in_spec,
                      w_in_spec, b_in_spec,
                      w_in_spec, b_in_spec,
                      wo_spec, bo_spec],
            out_specs=out_spec,
        ),
        compiler_params=pltpu.CompilerParams(
            dimension_semantics=("parallel", "arbitrary")),
    )(q_enc, k_enc, v_enc,
      p["wq"], p["bq"], p["wk"], p["bk"], p["wv"], p["bv"],
      p["wo"], p["bo"])

    return out


def _reference(q_enc, k_enc, v_enc, params, *, num_heads: int):
    """Pure-JAX f32 reference mirroring the PyTorch forward (dropout = identity,
    mask = None)."""
    B, S, D = q_enc.shape
    d_k = D // num_heads

    def lin(x, w, b):
        return x @ w + b

    q = lin(q_enc, params["wq"], params["bq"])
    k = lin(k_enc, params["wk"], params["bk"])
    v = lin(v_enc, params["wv"], params["bv"])

    def split(x):  # (B,S,D) -> (B,H,S,dk)
        return x.reshape(B, S, num_heads, d_k).transpose(0, 2, 1, 3)

    qh, kh, vh = split(q), split(k), split(v)
    scores = jnp.einsum("bhqd,bhkd->bhqk", qh, kh) / math.sqrt(d_k)
    attn = jax.nn.softmax(scores, axis=-1)
    out = jnp.einsum("bhqk,bhkd->bhqd", attn, vh)           # (B,H,S,dk)
    Hcat = out.transpose(0, 2, 1, 3).reshape(B, S, D)       # concat heads
    return lin(Hcat, params["wo"], params["bo"])


if __name__ == "__main__":
    # Small shapes consistent with the module: batch=2, seq=8, d_model=32, heads=4.
    B, S, D, NUM_HEADS = 2, 8, 32, 4

    key = jax.random.PRNGKey(0)
    ks = jax.random.split(key, 12)

    def init_w(k):
        bound = 1.0 / math.sqrt(D)
        return jax.random.uniform(k, (D, D), jnp.float32, -bound, bound)

    def init_b(k):
        bound = 1.0 / math.sqrt(D)
        return jax.random.uniform(k, (D,), jnp.float32, -bound, bound)

    params = {
        "wq": init_w(ks[0]), "bq": init_b(ks[1]),
        "wk": init_w(ks[2]), "bk": init_b(ks[3]),
        "wv": init_w(ks[4]), "bv": init_b(ks[5]),
        "wo": init_w(ks[6]), "bo": init_b(ks[7]),
    }

    q_enc = jax.random.normal(ks[8], (B, S, D), jnp.float32)
    k_enc = jax.random.normal(ks[9], (B, S, D), jnp.float32)
    v_enc = jax.random.normal(ks[10], (B, S, D), jnp.float32)

    ref = _reference(q_enc, k_enc, v_enc, params, num_heads=NUM_HEADS)

    # Tight numerical check with f32 MXU operands (only approx-reciprocal error).
    out_f32 = multihead_attention_v2(q_enc, k_enc, v_enc, params,
                                     num_heads=NUM_HEADS, mxu_dtype=jnp.float32)
    out_f32 = jax.block_until_ready(out_f32)
    assert out_f32.shape == (B, S, D)
    assert jnp.allclose(out_f32, ref, atol=2e-3, rtol=2e-3), "f32-MXU mismatch vs reference"

    # Default (production) path: bf16 MXU operands, f32 accumulation / softmax.
    out_bf16 = multihead_attention_v2(q_enc, k_enc, v_enc, params, num_heads=NUM_HEADS)
    out_bf16 = jax.block_until_ready(out_bf16)
    assert out_bf16.shape == (B, S, D)
    assert jnp.allclose(out_bf16, ref, atol=5e-2, rtol=5e-2), "bf16-MXU mismatch vs reference"

    print("KERNEL_OK")
</pallas_src>

<mosaic_0001>
module attributes {stable_mosaic.version = 11 : i64} {
  func.func @_mha_head_kernel(%arg0: i32, %arg1: i32, %arg2: memref<1x8x32xf32, #tpu.memory_space<vmem>>, %arg3: memref<1x8x32xf32, #tpu.memory_space<vmem>>, %arg4: memref<1x8x32xf32, #tpu.memory_space<vmem>>, %arg5: memref<1x32x8xf32, #tpu.memory_space<vmem>>, %arg6: memref<1x1x8xf32, #tpu.memory_space<vmem>>, %arg7: memref<1x32x8xf32, #tpu.memory_space<vmem>>, %arg8: memref<1x1x8xf32, #tpu.memory_space<vmem>>, %arg9: memref<1x32x8xf32, #tpu.memory_space<vmem>>, %arg10: memref<1x1x8xf32, #tpu.memory_space<vmem>>, %arg11: memref<1x8x32xf32, #tpu.memory_space<vmem>>, %arg12: memref<1x1x32xf32, #tpu.memory_space<vmem>>, %arg13: memref<1x8x32xf32, #tpu.memory_space<vmem>>) attributes {dimension_semantics = [#tpu.dimension_semantics<parallel>, #tpu.dimension_semantics<arbitrary>], iteration_bounds = array<i64: 2, 4>, scalar_prefetch = 0 : i64, scratch_operands = 0 : i64, tpu.core_type = #tpu.core_type<tc>, window_params = [{transform_indices = @transform_0, window_bounds = array<i64: 1, 8, 32>}, {transform_indices = @transform_1, window_bounds = array<i64: 1, 8, 32>}, {transform_indices = @transform_2, window_bounds = array<i64: 1, 8, 32>}, {transform_indices = @transform_3, window_bounds = array<i64: 1, 32, 8>}, {transform_indices = @transform_4, window_bounds = array<i64: 1, 1, 8>}, {transform_indices = @transform_5, window_bounds = array<i64: 1, 32, 8>}, {transform_indices = @transform_6, window_bounds = array<i64: 1, 1, 8>}, {transform_indices = @transform_7, window_bounds = array<i64: 1, 32, 8>}, {transform_indices = @transform_8, window_bounds = array<i64: 1, 1, 8>}, {transform_indices = @transform_9, window_bounds = array<i64: 1, 8, 32>}, {pipeline_mode = #tpu.pipeline_mode<synchronous>, transform_indices = @transform_10, window_bounds = array<i64: 1, 1, 32>}, {transform_indices = @transform_11, window_bounds = array<i64: 1, 8, 32>}]} {
    %c0_i32 = arith.constant 0 : i32
    %0 = arith.cmpi eq, %arg1, %c0_i32 : i32
    %1 = arith.extui %0 : i1 to i32
    %c0_i32_0 = arith.constant 0 : i32
    %2 = arith.cmpi ne, %1, %c0_i32_0 : i32
    scf.if %2 {
      %c0_44 = arith.constant 0 : index
      %c0_45 = arith.constant 0 : index
      %c0_46 = arith.constant 0 : index
      %53 = vector.load %arg12[%c0_44, %c0_45, %c0_46] : memref<1x1x32xf32, #tpu.memory_space<vmem>>, vector<1x1x32xf32>
      %54 = vector.shape_cast %53 : vector<1x1x32xf32> to vector<1x1x32xf32>
      %55 = vector.broadcast %54 : vector<1x1x32xf32> to vector<1x8x32xf32>
      %c0_47 = arith.constant 0 : index
      %c0_48 = arith.constant 0 : index
      %c0_49 = arith.constant 0 : index
      %56 = vector.load %arg13[%c0_47, %c0_48, %c0_49] : memref<1x8x32xf32, #tpu.memory_space<vmem>>, vector<1x8x32xf32>
      tpu.vector_store %arg13[%c0_47, %c0_48, %c0_49], %55 {strides = array<i32>} : memref<1x8x32xf32, #tpu.memory_space<vmem>>, vector<1x8x32xf32>,
    } else {
    }
    %c0 = arith.constant 0 : index
    %c0_1 = arith.constant 0 : index
    %c0_2 = arith.constant 0 : index
    %3 = vector.load %arg2[%c0, %c0_1, %c0_2] : memref<1x8x32xf32, #tpu.memory_space<vmem>>, vector<1x8x32xf32>
    %4 = vector.shape_cast %3 : vector<1x8x32xf32> to vector<8x32xf32>
    %c0_3 = arith.constant 0 : index
    %c0_4 = arith.constant 0 : index
    %c0_5 = arith.constant 0 : index
    %5 = vector.load %arg3[%c0_3, %c0_4, %c0_5] : memref<1x8x32xf32, #tpu.memory_space<vmem>>, vector<1x8x32xf32>
    %6 = vector.shape_cast %5 : vector<1x8x32xf32> to vector<8x32xf32>
    %c0_6 = arith.constant 0 : index
    %c0_7 = arith.constant 0 : index
    %c0_8 = arith.constant 0 : index
    %7 = vector.load %arg4[%c0_6, %c0_7, %c0_8] : memref<1x8x32xf32, #tpu.memory_space<vmem>>, vector<1x8x32xf32>
    %8 = vector.shape_cast %7 : vector<1x8x32xf32> to vector<8x32xf32>
    %c0_9 = arith.constant 0 : index
    %c0_10 = arith.constant 0 : index
    %c0_11 = arith.constant 0 : index
    %9 = vector.load %arg5[%c0_9, %c0_10, %c0_11] : memref<1x32x8xf32, #tpu.memory_space<vmem>>, vector<1x32x8xf32>
    %10 = vector.shape_cast %9 : vector<1x32x8xf32> to vector<32x8xf32>
    %c0_12 = arith.constant 0 : index
    %c0_13 = arith.constant 0 : index
    %c0_14 = arith.constant 0 : index
    %11 = vector.load %arg7[%c0_12, %c0_13, %c0_14] : memref<1x32x8xf32, #tpu.memory_space<vmem>>, vector<1x32x8xf32>
    %12 = vector.shape_cast %11 : vector<1x32x8xf32> to vector<32x8xf32>
    %c0_15 = arith.constant 0 : index
    %c0_16 = arith.constant 0 : index
    %c0_17 = arith.constant 0 : index
    %13 = vector.load %arg9[%c0_15, %c0_16, %c0_17] : memref<1x32x8xf32, #tpu.memory_space<vmem>>, vector<1x32x8xf32>
    %14 = vector.shape_cast %13 : vector<1x32x8xf32> to vector<32x8xf32>
    %c0_18 = arith.constant 0 : index
    %c0_19 = arith.constant 0 : index
    %c0_20 = arith.constant 0 : index
    %15 = vector.load %arg11[%c0_18, %c0_19, %c0_20] : memref<1x8x32xf32, #tpu.memory_space<vmem>>, vector<1x8x32xf32>
    %16 = vector.shape_cast %15 : vector<1x8x32xf32> to vector<8x32xf32>
    %cst = arith.constant dense<0.000000e+00> : vector<8x8xf32>
    %17 = tpu.matmul %4, %10, %cst {dimension_numbers = #tpu.dot_dimension_numbers<[1], [0], [0], [1], [0, 0, 1, 1], [], []>} : vector<8x32xf32>, vector<32x8xf32>, vector<8x8xf32> -> vector<8x8xf32>
    %c0_21 = arith.constant 0 : index
    %c0_22 = arith.constant 0 : index
    %c0_23 = arith.constant 0 : index
    %18 = vector.load %arg6[%c0_21, %c0_22, %c0_23] : memref<1x1x8xf32, #tpu.memory_space<vmem>>, vector<1x1x8xf32>
    %19 = vector.shape_cast %18 : vector<1x1x8xf32> to vector<1x8xf32>
    %20 = vector.broadcast %19 : vector<1x8xf32> to vector<8x8xf32>
    %21 = arith.addf %17, %20 : vector<8x8xf32>
    %cst_24 = arith.constant dense<0.000000e+00> : vector<8x8xf32>
    %22 = tpu.matmul %6, %12, %cst_24 {dimension_numbers = #tpu.dot_dimension_numbers<[1], [0], [0], [1], [0, 0, 1, 1], [], []>} : vector<8x32xf32>, vector<32x8xf32>, vector<8x8xf32> -> vector<8x8xf32>
    %c0_25 = arith.constant 0 : index
    %c0_26 = arith.constant 0 : index
    %c0_27 = arith.constant 0 : index
    %23 = vector.load %arg8[%c0_25, %c0_26, %c0_27] : memref<1x1x8xf32, #tpu.memory_space<vmem>>, vector<1x1x8xf32>
    %24 = vector.shape_cast %23 : vector<1x1x8xf32> to vector<1x8xf32>
    %25 = vector.broadcast %24 : vector<1x8xf32> to vector<8x8xf32>
    %26 = arith.addf %22, %25 : vector<8x8xf32>
    %cst_28 = arith.constant dense<0.000000e+00> : vector<8x8xf32>
    %27 = tpu.matmul %8, %14, %cst_28 {dimension_numbers = #tpu.dot_dimension_numbers<[1], [0], [0], [1], [0, 0, 1, 1], [], []>} : vector<8x32xf32>, vector<32x8xf32>, vector<8x8xf32> -> vector<8x8xf32>
    %c0_29 = arith.constant 0 : index
    %c0_30 = arith.constant 0 : index
    %c0_31 = arith.constant 0 : index
    %28 = vector.load %arg10[%c0_29, %c0_30, %c0_31] : memref<1x1x8xf32, #tpu.memory_space<vmem>>, vector<1x1x8xf32>
    %29 = vector.shape_cast %28 : vector<1x1x8xf32> to vector<1x8xf32>
    %30 = vector.broadcast %29 : vector<1x8xf32> to vector<8x8xf32>
    %31 = arith.addf %27, %30 : vector<8x8xf32>
    %cst_32 = arith.constant 0.353553385 : f32
    %32 = vector.broadcast %cst_32 : f32 to vector<8x8xf32>
    %33 = arith.mulf %21, %32 : vector<8x8xf32>
    %cst_33 = arith.constant dense<0.000000e+00> : vector<8x8xf32>
    %34 = tpu.matmul %33, %26, %cst_33 {dimension_numbers = #tpu.dot_dimension_numbers<[1], [1], [0], [0], [0, 0, 1, 0], [], []>} : vector<8x8xf32>, vector<8x8xf32>, vector<8x8xf32> -> vector<8x8xf32>
    %cst_34 = arith.constant dense<0xFF800000> : vector<8xf32>
    %35 = vector.multi_reduction <maximumf>, %34, %cst_34 [1] : vector<8x8xf32> to vector<8xf32>
    %36 = vector.shape_cast %35 : vector<8xf32> to vector<8x1xf32>
    %37 = vector.broadcast %36 : vector<8x1xf32> to vector<8x8xf32>
    %38 = arith.subf %34, %37 : vector<8x8xf32>
    %39 = math.exp %38 : vector<8x8xf32>
    %cst_35 = arith.constant dense<0.000000e+00> : vector<8xf32>
    %40 = vector.multi_reduction <add>, %39, %cst_35 [1] : vector<8x8xf32> to vector<8xf32>
    %41 = vector.shape_cast %40 : vector<8xf32> to vector<8x1xf32>
    %42 = tpu.reciprocal %41 {approx = true} : vector<8x1xf32> -> vector<8x1xf32>
    %43 = vector.broadcast %42 : vector<8x1xf32> to vector<8x8xf32>
    %44 = arith.mulf %39, %43 : vector<8x8xf32>
    %cst_36 = arith.constant dense<0.000000e+00> : vector<8x8xf32>
    %45 = tpu.matmul %44, %31, %cst_36 {dimension_numbers = #tpu.dot_dimension_numbers<[1], [0], [0], [1], [0, 0, 1, 1], [], []>} : vector<8x8xf32>, vector<8x8xf32>, vector<8x8xf32> -> vector<8x8xf32>
    %c0_37 = arith.constant 0 : index
    %c0_38 = arith.constant 0 : index
    %c0_39 = arith.constant 0 : index
    %46 = vector.load %arg13[%c0_37, %c0_38, %c0_39] : memref<1x8x32xf32, #tpu.memory_space<vmem>>, vector<1x8x32xf32>
    %47 = vector.shape_cast %46 : vector<1x8x32xf32> to vector<8x32xf32>
    %cst_40 = arith.constant dense<0.000000e+00> : vector<8x32xf32>
    %48 = tpu.matmul %45, %16, %cst_40 {dimension_numbers = #tpu.dot_dimension_numbers<[1], [0], [0], [1], [0, 0, 1, 1], [], []>} : vector<8x8xf32>, vector<8x32xf32>, vector<8x32xf32> -> vector<8x32xf32>
    %49 = arith.addf %47, %48 : vector<8x32xf32>
    %c0_41 = arith.constant 0 : index
    %c0_42 = arith.constant 0 : index
    %c0_43 = arith.constant 0 : index
    %50 = vector.load %arg13[%c0_41, %c0_42, %c0_43] : memref<1x8x32xf32, #tpu.memory_space<vmem>>, vector<1x8x32xf32>
    %51 = vector.shape_cast %50 : vector<1x8x32xf32> to vector<8x32xf32>
    %52 = vector.shape_cast %49 : vector<8x32xf32> to vector<1x8x32xf32>
    tpu.vector_store %arg13[%c0_41, %c0_42, %c0_43], %52 {strides = array<i32>} : memref<1x8x32xf32, #tpu.memory_space<vmem>>, vector<1x8x32xf32>,
    return
  }
  func.func @transform_0(%arg0: i32, %arg1: i32) -> (i32, i32, i32) {
    %c0_i32 = arith.constant 0 : i32
    %c0_i32_0 = arith.constant 0 : i32
    %c0_i32_1 = arith.constant 0 : i32
    return %arg0, %c0_i32, %c0_i32_0 : i32, i32, i32
  }
  func.func @transform_1(%arg0: i32, %arg1: i32) -> (i32, i32, i32) {
    %c0_i32 = arith.constant 0 : i32
    %c0_i32_0 = arith.constant 0 : i32
    %c0_i32_1 = arith.constant 0 : i32
    return %arg0, %c0_i32, %c0_i32_0 : i32, i32, i32
  }
  func.func @transform_2(%arg0: i32, %arg1: i32) -> (i32, i32, i32) {
    %c0_i32 = arith.constant 0 : i32
    %c0_i32_0 = arith.constant 0 : i32
    %c0_i32_1 = arith.constant 0 : i32
    return %arg0, %c0_i32, %c0_i32_0 : i32, i32, i32
  }
  func.func @transform_3(%arg0: i32, %arg1: i32) -> (i32, i32, i32) {
    %c0_i32 = arith.constant 0 : i32
    %c0_i32_0 = arith.constant 0 : i32
    %c0_i32_1 = arith.constant 0 : i32
    return %arg1, %c0_i32, %c0_i32_0 : i32, i32, i32
  }
  func.func @transform_4(%arg0: i32, %arg1: i32) -> (i32, i32, i32) {
    %c0_i32 = arith.constant 0 : i32
    %c0_i32_0 = arith.constant 0 : i32
    %c0_i32_1 = arith.constant 0 : i32
    return %arg1, %c0_i32, %c0_i32_0 : i32, i32, i32
  }
  func.func @transform_5(%arg0: i32, %arg1: i32) -> (i32, i32, i32) {
    %c0_i32 = arith.constant 0 : i32
    %c0_i32_0 = arith.constant 0 : i32
    %c0_i32_1 = arith.constant 0 : i32
    return %arg1, %c0_i32, %c0_i32_0 : i32, i32, i32
  }
  func.func @transform_6(%arg0: i32, %arg1: i32) -> (i32, i32, i32) {
    %c0_i32 = arith.constant 0 : i32
    %c0_i32_0 = arith.constant 0 : i32
    %c0_i32_1 = arith.constant 0 : i32
    return %arg1, %c0_i32, %c0_i32_0 : i32, i32, i32
  }
  func.func @transform_7(%arg0: i32, %arg1: i32) -> (i32, i32, i32) {
    %c0_i32 = arith.constant 0 : i32
    %c0_i32_0 = arith.constant 0 : i32
    %c0_i32_1 = arith.constant 0 : i32
    return %arg1, %c0_i32, %c0_i32_0 : i32, i32, i32
  }
  func.func @transform_8(%arg0: i32, %arg1: i32) -> (i32, i32, i32) {
    %c0_i32 = arith.constant 0 : i32
    %c0_i32_0 = arith.constant 0 : i32
    %c0_i32_1 = arith.constant 0 : i32
    return %arg1, %c0_i32, %c0_i32_0 : i32, i32, i32
  }
  func.func @transform_9(%arg0: i32, %arg1: i32) -> (i32, i32, i32) {
    %c0_i32 = arith.constant 0 : i32
    %c0_i32_0 = arith.constant 0 : i32
    %c0_i32_1 = arith.constant 0 : i32
    return %arg1, %c0_i32, %c0_i32_0 : i32, i32, i32
  }
  func.func @transform_10(%arg0: i32, %arg1: i32) -> (i32, i32, i32) {
    %c0_i32 = arith.constant 0 : i32
    %c0_i32_0 = arith.constant 0 : i32
    %c0_i32_1 = arith.constant 0 : i32
    %c0_i32_2 = arith.constant 0 : i32
    return %c0_i32, %c0_i32_0, %c0_i32_1 : i32, i32, i32
  }
  func.func @transform_11(%arg0: i32, %arg1: i32) -> (i32, i32, i32) {
    %c0_i32 = arith.constant 0 : i32
    %c0_i32_0 = arith.constant 0 : i32
    %c0_i32_1 = arith.constant 0 : i32
    return %arg0, %c0_i32, %c0_i32_0 : i32, i32, i32
  }
}

</mosaic_0001>

<llo_original>
// kernel: tpu_custom_call.1
$region0: #{tpu_custom_call.1}
  #allocation0 [shape = 'u32[]', space=smem, size = 0x4, offset = 0x4, fixed_abs, tag = 'smem constant byte address 0x4 - core index']
  #allocation1 [shape = 'u32[144,128]{1,0:T(1,128)}', space=vmem, size = 0x12000, scoped, tag = 'internal scratch']
  %s0 = inlined_call_operand.vmem [shape: f32[2,8,32], index: 0, kind: input, shape index: {}]
  %s1 = inlined_call_operand.vmem [shape: f32[2,8,32], index: 1, kind: input, shape index: {}]
  %s2 = inlined_call_operand.vmem [shape: f32[2,8,32], index: 2, kind: input, shape index: {}]
  %s3 = inlined_call_operand.vmem [shape: f32[4,32,8], index: 3, kind: input, shape index: {}]
  %s4 = inlined_call_operand.vmem [shape: f32[4,1,8], index: 4, kind: input, shape index: {}]
  %s5 = inlined_call_operand.vmem [shape: f32[4,32,8], index: 5, kind: input, shape index: {}]
  %s6 = inlined_call_operand.vmem [shape: f32[4,1,8], index: 6, kind: input, shape index: {}]
  %s7 = inlined_call_operand.vmem [shape: f32[4,32,8], index: 7, kind: input, shape index: {}]
  %s8 = inlined_call_operand.vmem [shape: f32[4,1,8], index: 8, kind: input, shape index: {}]
  %s9 = inlined_call_operand.vmem [shape: f32[4,8,32], index: 9, kind: input, shape index: {}]
  %s10 = inlined_call_operand.vmem [shape: f32[1,1,32], index: 10, kind: input, shape index: {}]
  %s11 = inlined_call_operand.hbm [shape: f32[2,8,32], index: 11, kind: output, shape index: {}]
  %s12 = sld [smem:[#allocation0]]
  $region81: #{tpu_custom_call.1} parent=0
    _
  %s14 = ssub.s32 1, %s12
  %s15 = scalar_select 0, %s14, %s12
  $region1: #{tpu_custom_call.1} parent=0
    #allocation2 [shape = 'u8[8192]{0}', space=vmem, size = 0x2000, scoped, tag = 'output window, operand 0']
    #allocation3 [shape = 's32[2]{0}', space=sflag, size = 0x8, scoped, tag = 'scoped memory for tpu_custom_call.1']
    %16 = vsyncpa [#allocation3], 0
    %s17 = scalar_lea.sflag [#allocation3], 1
    %18 = vsyncpa %s17, 0
    loop: start=0, step=1, limit=10
    $region2: #{tpu_custom_call.1} parent=1 // loop_pre_header
      _
    $region3: #{tpu_custom_call.1} parent=1 // loop_header
      %s20 = sphi 0, %s24
      %p21 = scmp.ge.s32.totalorder %s20, 10
      %s27 = sphi 0, %s39
      %s28 = sphi 0, %s35
      %s29 = sphi 0, %s27
      %s30 = sphi 0, %s28
      %s31 = sphi 0, %s29
      %s32 = sphi 0, %s30
      %s42 = sphi 0, %s44
      %s45 = sphi 0, %s42
      %s46 = sphi 0, %s45
      %s62 = sphi 0, %s46
      %s68 = sphi 0, %s70
      %s71 = sphi 0, %s68
      %s72 = sphi 0, %s71
      %s88 = sphi 0, %s72
      %s94 = sphi 0, %s96
      %s97 = sphi 0, %s94
      %s98 = sphi 0, %s97
      %s114 = sphi 0, %s98
      %s120 = sphi 0, %s122
      %s123 = sphi 0, %s120
      %s124 = sphi 0, %s123
      %s140 = sphi 0, %s124
      %s146 = sphi 0, %s148
      %s149 = sphi 0, %s146
      %s150 = sphi 0, %s149
      %s166 = sphi 0, %s150
      %s172 = sphi 0, %s174
      %s175 = sphi 0, %s172
      %s176 = sphi 0, %s175
      %s192 = sphi 0, %s176
      %s198 = sphi 0, %s200
      %s201 = sphi 0, %s198
      %s202 = sphi 0, %s201
      %s218 = sphi 0, %s202
      %s224 = sphi 0, %s226
      %s227 = sphi 0, %s224
      %s228 = sphi 0, %s227
      %s244 = sphi 0, %s228
      %s250 = sphi 0, %s252
      %s253 = sphi 0, %s250
      %s254 = sphi 0, %s253
      %s270 = sphi 0, %s254
      %s276 = sphi 0, %s278
      %s279 = sphi 0, %s276
      %s280 = sphi 0, %s279
      %s296 = sphi 0, %s280
      %s300 = sphi 0, %s300
      %s302 = sphi 0, %s300
      %s303 = sphi 0, %s302
      %s317 = sphi 0, %s303
      %s323 = sphi 0, %s325
      %s326 = sphi 0, %s323
      %s327 = sphi 0, %s326
      %s343 = sphi 0, %s327
    $region4: #{tpu_custom_call.1} parent=1 // loop_header_branch
      %23 = sbr.rel (%p21) target = $region8
    $region5: #{tpu_custom_call.1} parent=1 // loop_body
      %s25 = ssub.s32 %s20, 1
      %s26 = ssub.s32 %s20, 2
      %s33 = sadd.s32 1, %s28
      %p34 = scmp.ge.s32.totalorder %s33, 4
      %s35 = scalar_select %p34, 0, %s33
      %s36 = sadd.s32 1, %s27
      %s37 = scalar_select %p34, %s36, %s27
      %p38 = scmp.ge.s32.totalorder %s37, 2
      %s39 = scalar_select %p38, 0, %s37
      %s40 = ssub.s32 %s27, %s39
      %p41 = scmp.eq.s32.totalorder %s40, 0
      %s43 = sadd.s32 %s42, 1
      %s44 = scalar_select %p41, %s42, %s43
      %p47 = pneg %p41
      %p48 = scmp.eq.s32.totalorder %s20, 7
      %p49 = por %p47, %p48
      %p50 = scmp.ne.s32.totalorder %s42, %s45
      %p51 = scmp.eq.s32.totalorder %s20, 0
      %p52 = por %p50, %p51
      %p53 = scmp.ne.s32.totalorder %s42, %s45
      %p54 = scmp.eq.s32.totalorder %s25, 7
      %p55 = por %p53, %p54
      %p56 = scmp.ne.s32.totalorder %s45, %s46
      %p57 = scmp.eq.s32.totalorder %s25, 0
      %p58 = por %p56, %p57
      %p59 = scmp.ne.s32.totalorder %s45, %s46
      %p60 = scmp.eq.s32.totalorder %s26, 7
      %p61 = por %p59, %p60
      %p63 = scmp.ne.s32.totalorder %s46, %s62
      %p64 = scmp.eq.s32.totalorder %s26, 0
      %p65 = por %p63, %p64
      %s66 = ssub.s32 %s27, %s39
      %p67 = scmp.eq.s32.totalorder %s66, 0
      %s69 = sadd.s32 %s68, 1
      %s70 = scalar_select %p67, %s68, %s69
      %p73 = pneg %p67
      %p74 = scmp.eq.s32.totalorder %s20, 7
      %p75 = por %p73, %p74
      %p76 = scmp.ne.s32.totalorder %s68, %s71
      %p77 = scmp.eq.s32.totalorder %s20, 0
      %p78 = por %p76, %p77
      %p79 = scmp.ne.s32.totalorder %s68, %s71
      %p80 = scmp.eq.s32.totalorder %s25, 7
      %p81 = por %p79, %p80
      %p82 = scmp.ne.s32.totalorder %s71, %s72
      %p83 = scmp.eq.s32.totalorder %s25, 0
      %p84 = por %p82, %p83
      %p85 = scmp.ne.s32.totalorder %s71, %s72
      %p86 = scmp.eq.s32.totalorder %s26, 7
      %p87 = por %p85, %p86
      %p89 = scmp.ne.s32.totalorder %s72, %s88
      %p90 = scmp.eq.s32.totalorder %s26, 0
      %p91 = por %p89, %p90
      %s92 = ssub.s32 %s27, %s39
      %p93 = scmp.eq.s32.totalorder %s92, 0
      %s95 = sadd.s32 %s94, 1
      %s96 = scalar_select %p93, %s94, %s95
      %p99 = pneg %p93
      %p100 = scmp.eq.s32.totalorder %s20, 7
      %p101 = por %p99, %p100
      %p102 = scmp.ne.s32.totalorder %s94, %s97
      %p103 = scmp.eq.s32.totalorder %s20, 0
      %p104 = por %p102, %p103
      %p105 = scmp.ne.s32.totalorder %s94, %s97
      %p106 = scmp.eq.s32.totalorder %s25, 7
      %p107 = por %p105, %p106
      %p108 = scmp.ne.s32.totalorder %s97, %s98
      %p109 = scmp.eq.s32.totalorder %s25, 0
      %p110 = por %p108, %p109
      %p111 = scmp.ne.s32.totalorder %s97, %s98
      %p112 = scmp.eq.s32.totalorder %s26, 7
      %p113 = por %p111, %p112
      %p115 = scmp.ne.s32.totalorder %s98, %s114
      %p116 = scmp.eq.s32.totalorder %s26, 0
      %p117 = por %p115, %p116
      %s118 = ssub.s32 %s28, %s35
      %p119 = scmp.eq.s32.totalorder %s118, 0
      %s121 = sadd.s32 %s120, 1
      %s122 = scalar_select %p119, %s120, %s121
      %p125 = pneg %p119
      %p126 = scmp.eq.s32.totalorder %s20, 7
      %p127 = por %p125, %p126
      %p128 = scmp.ne.s32.totalorder %s120, %s123
      %p129 = scmp.eq.s32.totalorder %s20, 0
      %p130 = por %p128, %p129
      %p131 = scmp.ne.s32.totalorder %s120, %s123
      %p132 = scmp.eq.s32.totalorder %s25, 7
      %p133 = por %p131, %p132
      %p134 = scmp.ne.s32.totalorder %s123, %s124
      %p135 = scmp.eq.s32.totalorder %s25, 0
      %p136 = por %p134, %p135
      %p137 = scmp.ne.s32.totalorder %s123, %s124
      %p138 = scmp.eq.s32.totalorder %s26, 7
      %p139 = por %p137, %p138
      %p141 = scmp.ne.s32.totalorder %s124, %s140
      %p142 = scmp.eq.s32.totalorder %s26, 0
      %p143 = por %p141, %p142
      %s144 = ssub.s32 %s28, %s35
      %p145 = scmp.eq.s32.totalorder %s144, 0
      %s147 = sadd.s32 %s146, 1
      %s148 = scalar_select %p145, %s146, %s147
      %p151 = pneg %p145
      %p152 = scmp.eq.s32.totalorder %s20, 7
      %p153 = por %p151, %p152
      %p154 = scmp.ne.s32.totalorder %s146, %s149
      %p155 = scmp.eq.s32.totalorder %s20, 0
      %p156 = por %p154, %p155
      %p157 = scmp.ne.s32.totalorder %s146, %s149
      %p158 = scmp.eq.s32.totalorder %s25, 7
      %p159 = por %p157, %p158
      %p160 = scmp.ne.s32.totalorder %s149, %s150
      %p161 = scmp.eq.s32.totalorder %s25, 0
      %p162 = por %p160, %p161
      %p163 = scmp.ne.s32.totalorder %s149, %s150
      %p164 = scmp.eq.s32.totalorder %s26, 7
      %p165 = por %p163, %p164
      %p167 = scmp.ne.s32.totalorder %s150, %s166
      %p168 = scmp.eq.s32.totalorder %s26, 0
      %p169 = por %p167, %p168
      %s170 = ssub.s32 %s28, %s35
      %p171 = scmp.eq.s32.totalorder %s170, 0
      %s173 = sadd.s32 %s172, 1
      %s174 = scalar_select %p171, %s172, %s173
      %p177 = pneg %p171
      %p178 = scmp.eq.s32.totalorder %s20, 7
      %p179 = por %p177, %p178
      %p180 = scmp.ne.s32.totalorder %s172, %s175
      %p181 = scmp.eq.s32.totalorder %s20, 0
      %p182 = por %p180, %p181
      %p183 = scmp.ne.s32.totalorder %s172, %s175
      %p184 = scmp.eq.s32.totalorder %s25, 7
      %p185 = por %p183, %p184
      %p186 = scmp.ne.s32.totalorder %s175, %s176
      %p187 = scmp.eq.s32.totalorder %s25, 0
      %p188 = por %p186, %p187
      %p189 = scmp.ne.s32.totalorder %s175, %s176
      %p190 = scmp.eq.s32.totalorder %s26, 7
      %p191 = por %p189, %p190
      %p193 = scmp.ne.s32.totalorder %s176, %s192
      %p194 = scmp.eq.s32.totalorder %s26, 0
      %p195 = por %p193, %p194
      %s196 = ssub.s32 %s28, %s35
      %p197 = scmp.eq.s32.totalorder %s196, 0
      %s199 = sadd.s32 %s198, 1
      %s200 = scalar_select %p197, %s198, %s199
      %p203 = pneg %p197
      %p204 = scmp.eq.s32.totalorder %s20, 7
      %p205 = por %p203, %p204
      %p206 = scmp.ne.s32.totalorder %s198, %s201
      %p207 = scmp.eq.s32.totalorder %s20, 0
      %p208 = por %p206, %p207
      %p209 = scmp.ne.s32.totalorder %s198, %s201
      %p210 = scmp.eq.s32.totalorder %s25, 7
      %p211 = por %p209, %p210
      %p212 = scmp.ne.s32.totalorder %s201, %s202
      %p213 = scmp.eq.s32.totalorder %s25, 0
      %p214 = por %p212, %p213
      %p215 = scmp.ne.s32.totalorder %s201, %s202
      %p216 = scmp.eq.s32.totalorder %s26, 7
      %p217 = por %p215, %p216
      %p219 = scmp.ne.s32.totalorder %s202, %s218
      %p220 = scmp.eq.s32.totalorder %s26, 0
      %p221 = por %p219, %p220
      %s222 = ssub.s32 %s28, %s35
      %p223 = scmp.eq.s32.totalorder %s222, 0
      %s225 = sadd.s32 %s224, 1
      %s226 = scalar_select %p223, %s224, %s225
      %p229 = pneg %p223
      %p230 = scmp.eq.s32.totalorder %s20, 7
      %p231 = por %p229, %p230
      %p232 = scmp.ne.s32.totalorder %s224, %s227
      %p233 = scmp.eq.s32.totalorder %s20, 0
      %p234 = por %p232, %p233
      %p235 = scmp.ne.s32.totalorder %s224, %s227
      %p236 = scmp.eq.s32.totalorder %s25, 7
      %p237 = por %p235, %p236
      %p238 = scmp.ne.s32.totalorder %s227, %s228
      %p239 = scmp.eq.s32.totalorder %s25, 0
      %p240 = por %p238, %p239
      %p241 = scmp.ne.s32.totalorder %s227, %s228
      %p242 = scmp.eq.s32.totalorder %s26, 7
      %p243 = por %p241, %p242
      %p245 = scmp.ne.s32.totalorder %s228, %s244
      %p246 = scmp.eq.s32.totalorder %s26, 0
      %p247 = por %p245, %p246
      %s248 = ssub.s32 %s28, %s35
      %p249 = scmp.eq.s32.totalorder %s248, 0
      %s251 = sadd.s32 %s250, 1
      %s252 = scalar_select %p249, %s250, %s251
      %p255 = pneg %p249
      %p256 = scmp.eq.s32.totalorder %s20, 7
      %p257 = por %p255, %p256
      %p258 = scmp.ne.s32.totalorder %s250, %s253
      %p259 = scmp.eq.s32.totalorder %s20, 0
      %p260 = por %p258, %p259
      %p261 = scmp.ne.s32.totalorder %s250, %s253
      %p262 = scmp.eq.s32.totalorder %s25, 7
      %p263 = por %p261, %p262
      %p264 = scmp.ne.s32.totalorder %s253, %s254
      %p265 = scmp.eq.s32.totalorder %s25, 0
      %p266 = por %p264, %p265
      %p267 = scmp.ne.s32.totalorder %s253, %s254
      %p268 = scmp.eq.s32.totalorder %s26, 7
      %p269 = por %p267, %p268
      %p271 = scmp.ne.s32.totalorder %s254, %s270
      %p272 = scmp.eq.s32.totalorder %s26, 0
      %p273 = por %p271, %p272
      %s274 = ssub.s32 %s28, %s35
      %p275 = scmp.eq.s32.totalorder %s274, 0
      %s277 = sadd.s32 %s276, 1
      %s278 = scalar_select %p275, %s276, %s277
      %p281 = pneg %p275
      %p282 = scmp.eq.s32.totalorder %s20, 7
      %p283 = por %p281, %p282
      %p284 = scmp.ne.s32.totalorder %s276, %s279
      %p285 = scmp.eq.s32.totalorder %s20, 0
      %p286 = por %p284, %p285
      %p287 = scmp.ne.s32.totalorder %s276, %s279
      %p288 = scmp.eq.s32.totalorder %s25, 7
      %p289 = por %p287, %p288
      %p290 = scmp.ne.s32.totalorder %s279, %s280
      %p291 = scmp.eq.s32.totalorder %s25, 0
      %p292 = por %p290, %p291
      %p293 = scmp.ne.s32.totalorder %s279, %s280
      %p294 = scmp.eq.s32.totalorder %s26, 7
      %p295 = por %p293, %p294
      %p297 = scmp.ne.s32.totalorder %s280, %s296
      %p298 = scmp.eq.s32.totalorder %s26, 0
      %p299 = por %p297, %p298
      %s301 = sadd.s32 %s300, 1
      %p304 = scmp.eq.s32.totalorder %s20, 7
      %p305 = scmp.ne.s32.totalorder %s300, %s302
      %p306 = scmp.eq.s32.totalorder %s20, 0
      %p307 = por %p305, %p306
      %p308 = scmp.ne.s32.totalorder %s300, %s302
      %p309 = scmp.eq.s32.totalorder %s25, 7
      %p310 = por %p308, %p309
      %p311 = scmp.ne.s32.totalorder %s302, %s303
      %p312 = scmp.eq.s32.totalorder %s25, 0
      %p313 = por %p311, %p312
      %p314 = scmp.ne.s32.totalorder %s302, %s303
      %p315 = scmp.eq.s32.totalorder %s26, 7
      %p316 = por %p314, %p315
      %p318 = scmp.ne.s32.totalorder %s303, %s317
      %p319 = scmp.eq.s32.totalorder %s26, 0
      %p320 = por %p318, %p319
      %s321 = ssub.s32 %s27, %s39
      %p322 = scmp.eq.s32.totalorder %s321, 0
      %s324 = sadd.s32 %s323, 1
      %s325 = scalar_select %p322, %s323, %s324
      %p328 = pneg %p322
      %p329 = scmp.eq.s32.totalorder %s20, 7
      %p330 = por %p328, %p329
      %p331 = scmp.ne.s32.totalorder %s323, %s326
      %p332 = scmp.eq.s32.totalorder %s20, 0
      %p333 = por %p331, %p332
      %p334 = scmp.ne.s32.totalorder %s323, %s326
      %p335 = scmp.eq.s32.totalorder %s25, 7
      %p336 = por %p334, %p335
      %p337 = scmp.ne.s32.totalorder %s326, %s327
      %p338 = scmp.eq.s32.totalorder %s25, 0
      %p339 = por %p337, %p338
      %p340 = scmp.ne.s32.totalorder %s326, %s327
      %p341 = scmp.eq.s32.totalorder %s26, 7
      %p342 = por %p340, %p341
      %p344 = scmp.ne.s32.totalorder %s327, %s343
      %p345 = scmp.eq.s32.totalorder %s26, 0
      %p346 = por %p344, %p345
      %p347 = scmp.le.s32.totalorder 1, %s20
      %p348 = scmp.lt.s32.totalorder %s20, 9
      %p349 = pnand %p347, %p348
      %p350 = pneg %p349
      // Predicated region
      $region9: #{tpu_custom_call.1} parent=5 // pred_check
        _
      $region10: #{tpu_custom_call.1} parent=5 // pred_check_branch
        %352 = sbr.rel (%p349) target = $region12
      $region11: #{tpu_custom_call.1} parent=5 // pred_region
        %s353 = ssub.s32 %s20, 1
        // Predicated region
        $region13: #{tpu_custom_call.1} parent=11 // pred_check
          %p354 = pneg %p313
        $region14: #{tpu_custom_call.1} parent=11 // pred_check_branch
          %356 = sbr.rel (%p354) target = $region16
        $region15: #{tpu_custom_call.1} parent=11 // pred_region
          _
        $region16: #{tpu_custom_call.1} parent=11 // pred_fallthru
          _
      $region12: #{tpu_custom_call.1} parent=5 // pred_fallthru
        _
      %p357 = scmp.lt.s32.totalorder %s20, 8
      // Predicated region
      $region17: #{tpu_custom_call.1} parent=5 // pred_check
        %p358 = pneg %p357
      $region18: #{tpu_custom_call.1} parent=5 // pred_check_branch
        %360 = sbr.rel (%p358) target = $region20
      $region19: #{tpu_custom_call.1} parent=5 // pred_region
        // Predicated region
        $region21: #{tpu_custom_call.1} parent=19 // pred_check
          %p361 = pneg %p52
        $region22: #{tpu_custom_call.1} parent=19 // pred_check_branch
          %363 = sbr.rel (%p361) target = $region24
        $region23: #{tpu_custom_call.1} parent=19 // pred_region
          %p364 = scmp.lt.s32.totalorder %s27, 1
          %s365 = scalar_select %p364, %s27, 1
          %s366 = smul.addr %s365, 8
          %s367 = scalar_lea.vmem %s0, %s366
        $region24: #{tpu_custom_call.1} parent=19 // pred_fallthru
          _
        // Predicated region
        $region25: #{tpu_custom_call.1} parent=19 // pred_check
          %p368 = pneg %p78
        $region26: #{tpu_custom_call.1} parent=19 // pred_check_branch
          %370 = sbr.rel (%p368) target = $region28
        $region27: #{tpu_custom_call.1} parent=19 // pred_region
          %p371 = scmp.lt.s32.totalorder %s27, 1
          %s372 = scalar_select %p371, %s27, 1
          %s373 = smul.addr %s372, 8
          %s374 = scalar_lea.vmem %s1, %s373
        $region28: #{tpu_custom_call.1} parent=19 // pred_fallthru
          _
        // Predicated region
        $region29: #{tpu_custom_call.1} parent=19 // pred_check
          %p375 = pneg %p104
        $region30: #{tpu_custom_call.1} parent=19 // pred_check_branch
          %377 = sbr.rel (%p375) target = $region32
        $region31: #{tpu_custom_call.1} parent=19 // pred_region
          %p378 = scmp.lt.s32.totalorder %s27, 1
          %s379 = scalar_select %p378, %s27, 1
          %s380 = smul.addr %s379, 8
          %s381 = scalar_lea.vmem %s2, %s380
        $region32: #{tpu_custom_call.1} parent=19 // pred_fallthru
          _
        // Predicated region
        $region33: #{tpu_custom_call.1} parent=19 // pred_check
          %p382 = pneg %p130
        $region34: #{tpu_custom_call.1} parent=19 // pred_check_branch
          %384 = sbr.rel (%p382) target = $region36
        $region35: #{tpu_custom_call.1} parent=19 // pred_region
          %p385 = scmp.lt.s32.totalorder %s28, 3
          %s386 = scalar_select %p385, %s28, 3
          %s387 = smul.addr %s386, 4
          %s388 = smul.addr %s387, 8
          %s389 = scalar_lea.vmem %s3, %s388
        $region36: #{tpu_custom_call.1} parent=19 // pred_fallthru
          _
        // Predicated region
        $region37: #{tpu_custom_call.1} parent=19 // pred_check
          %p390 = pneg %p156
        $region38: #{tpu_custom_call.1} parent=19 // pred_check_branch
          %392 = sbr.rel (%p390) target = $region40
        $region39: #{tpu_custom_call.1} parent=19 // pred_region
          %p393 = scmp.lt.s32.totalorder %s28, 3
          %s394 = scalar_select %p393, %s28, 3
          %s395 = scalar_lea.vmem %s4, %s394
        $region40: #{tpu_custom_call.1} parent=19 // pred_fallthru
          _
        // Predicated region
        $region41: #{tpu_custom_call.1} parent=19 // pred_check
          %p396 = pneg %p182
        $region42: #{tpu_custom_call.1} parent=19 // pred_check_branch
          %398 = sbr.rel (%p396) target = $region44
        $region43: #{tpu_custom_call.1} parent=19 // pred_region
          %p399 = scmp.lt.s32.totalorder %s28, 3
          %s400 = scalar_select %p399, %s28, 3
          %s401 = smul.addr %s400, 4
          %s402 = smul.addr %s401, 8
          %s403 = scalar_lea.vmem %s5, %s402
        $region44: #{tpu_custom_call.1} parent=19 // pred_fallthru
          _
        // Predicated region
        $region45: #{tpu_custom_call.1} parent=19 // pred_check
          %p404 = pneg %p208
        $region46: #{tpu_custom_call.1} parent=19 // pred_check_branch
          %406 = sbr.rel (%p404) target = $region48
        $region47: #{tpu_custom_call.1} parent=19 // pred_region
          %p407 = scmp.lt.s32.totalorder %s28, 3
          %s408 = scalar_select %p407, %s28, 3
          %s409 = scalar_lea.vmem %s6, %s408
        $region48: #{tpu_custom_call.1} parent=19 // pred_fallthru
          _
        // Predicated region
        $region49: #{tpu_custom_call.1} parent=19 // pred_check
          %p410 = pneg %p234
        $region50: #{tpu_custom_call.1} parent=19 // pred_check_branch
          %412 = sbr.rel (%p410) target = $region52
        $region51: #{tpu_custom_call.1} parent=19 // pred_region
          %p413 = scmp.lt.s32.totalorder %s28, 3
          %s414 = scalar_select %p413, %s28, 3
          %s415 = smul.addr %s414, 4
          %s416 = smul.addr %s415, 8
          %s417 = scalar_lea.vmem %s7, %s416
        $region52: #{tpu_custom_call.1} parent=19 // pred_fallthru
          _
        // Predicated region
        $region53: #{tpu_custom_call.1} parent=19 // pred_check
          %p418 = pneg %p260
        $region54: #{tpu_custom_call.1} parent=19 // pred_check_branch
          %420 = sbr.rel (%p418) target = $region56
        $region55: #{tpu_custom_call.1} parent=19 // pred_region
          %p421 = scmp.lt.s32.totalorder %s28, 3
          %s422 = scalar_select %p421, %s28, 3
          %s423 = scalar_lea.vmem %s8, %s422
        $region56: #{tpu_custom_call.1} parent=19 // pred_fallthru
          _
        // Predicated region
        $region57: #{tpu_custom_call.1} parent=19 // pred_check
          %p424 = pneg %p286
        $region58: #{tpu_custom_call.1} parent=19 // pred_check_branch
          %426 = sbr.rel (%p424) target = $region60
        $region59: #{tpu_custom_call.1} parent=19 // pred_region
          %p427 = scmp.lt.s32.totalorder %s28, 3
          %s428 = scalar_select %p427, %s28, 3
          %s429 = smul.addr %s428, 8
          %s430 = scalar_lea.vmem %s9, %s429
        $region60: #{tpu_custom_call.1} parent=19 // pred_fallthru
          _
      $region20: #{tpu_custom_call.1} parent=5 // pred_fallthru
        _
      %p431 = scmp.le.s32.totalorder 1, %s20
      %p432 = scmp.lt.s32.totalorder %s20, 9
      %p433 = pnand %p431, %p432
      %p434 = pneg %p433
      // Predicated region
      $region61: #{tpu_custom_call.1} parent=5 // pred_check
        _
      $region62: #{tpu_custom_call.1} parent=5 // pred_check_branch
        %436 = sbr.rel (%p433) target = $region64
      $region63: #{tpu_custom_call.1} parent=5 // pred_region
        %s437 = ssub.s32 %s20, 1
        %p438 = scmp.lt.s32.totalorder %s29, 1
        %s439 = scalar_select %p438, %s29, 1
        %s440 = smul.addr %s439, 8
        %s441 = scalar_lea.vmem %s0, %s440
        %p442 = pneg %p58
        %p443 = pneg %p55
        %p444 = scmp.lt.s32.totalorder %s29, 1
        %s445 = scalar_select %p444, %s29, 1
        %s446 = smul.addr %s445, 8
        %s447 = scalar_lea.vmem %s1, %s446
        %p448 = pneg %p84
        %p449 = pneg %p81
        %p450 = scmp.lt.s32.totalorder %s29, 1
        %s451 = scalar_select %p450, %s29, 1
        %s452 = smul.addr %s451, 8
        %s453 = scalar_lea.vmem %s2, %s452
        %p454 = pneg %p110
        %p455 = pneg %p107
        %p456 = scmp.lt.s32.totalorder %s30, 3
        %s457 = scalar_select %p456, %s30, 3
        %s458 = smul.addr %s457, 4
        %s459 = smul.addr %s458, 8
        %s460 = scalar_lea.vmem %s3, %s459
        %p461 = pneg %p136
        %p462 = pneg %p133
        %p463 = scmp.lt.s32.totalorder %s30, 3
        %s464 = scalar_select %p463, %s30, 3
        %s465 = scalar_lea.vmem %s4, %s464
        %p466 = pneg %p162
        %p467 = pneg %p159
        %p468 = scmp.lt.s32.totalorder %s30, 3
        %s469 = scalar_select %p468, %s30, 3
        %s470 = smul.addr %s469, 4
        %s471 = smul.addr %s470, 8
        %s472 = scalar_lea.vmem %s5, %s471
        %p473 = pneg %p188
        %p474 = pneg %p185
        %p475 = scmp.lt.s32.totalorder %s30, 3
        %s476 = scalar_select %p475, %s30, 3
        %s477 = scalar_lea.vmem %s6, %s476
        %p478 = pneg %p214
        %p479 = pneg %p211
        %p480 = scmp.lt.s32.totalorder %s30, 3
        %s481 = scalar_select %p480, %s30, 3
        %s482 = smul.addr %s481, 4
        %s483 = smul.addr %s482, 8
        %s484 = scalar_lea.vmem %s7, %s483
        %p485 = pneg %p240
        %p486 = pneg %p237
        %p487 = scmp.lt.s32.totalorder %s30, 3
        %s488 = scalar_select %p487, %s30, 3
        %s489 = scalar_lea.vmem %s8, %s488
        %p490 = pneg %p266
        %p491 = pneg %p263
        %p492 = scmp.lt.s32.totalorder %s30, 3
        %s493 = scalar_select %p492, %s30, 3
        %s494 = smul.addr %s493, 8
        %s495 = scalar_lea.vmem %s9, %s494
        %p496 = pneg %p292
        %p497 = pneg %p289
        %p498 = pneg %p313
        %p499 = pneg %p310
        %p500 = pneg %p339
        %p501 = pneg %p336
        %s502 = sand.u32 %s326, 1
        %s503 = scalar_lea.sflag [#allocation3], %s502
        %s504 = sand.u32 %s326, 1
        %s505 = smul.addr %s504, 8
        %s506 = scalar_lea.vmem [#allocation2], %s505
        %p507 = scmp.lt.s32.totalorder %s29, 1
        %s508 = scalar_select %p507, %s29, 1
        %s509 = smul.addr %s508, 8
        %s510 = scalar_lea.vmem %s0, %s509
        %p511 = scmp.lt.s32.totalorder %s29, 1
        %s512 = scalar_select %p511, %s29, 1
        %s513 = smul.addr %s512, 8
        %s514 = scalar_lea.vmem %s1, %s513
        %p515 = scmp.lt.s32.totalorder %s29, 1
        %s516 = scalar_select %p515, %s29, 1
        %s517 = smul.addr %s516, 8
        %s518 = scalar_lea.vmem %s2, %s517
        %p519 = scmp.lt.s32.totalorder %s30, 3
        %s520 = scalar_select %p519, %s30, 3
        %s521 = smul.addr %s520, 4
        %s522 = smul.addr %s521, 8
        %s523 = scalar_lea.vmem %s3, %s522
        %p524 = scmp.lt.s32.totalorder %s30, 3
        %s525 = scalar_select %p524, %s30, 3
        %s526 = scalar_lea.vmem %s4, %s525
        %p527 = scmp.lt.s32.totalorder %s30, 3
        %s528 = scalar_select %p527, %s30, 3
        %s529 = smul.addr %s528, 4
        %s530 = smul.addr %s529, 8
        %s531 = scalar_lea.vmem %s5, %s530
        %p532 = scmp.lt.s32.totalorder %s30, 3
        %s533 = scalar_select %p532, %s30, 3
        %s534 = scalar_lea.vmem %s6, %s533
        %p535 = scmp.lt.s32.totalorder %s30, 3
        %s536 = scalar_select %p535, %s30, 3
        %s537 = smul.addr %s536, 4
        %s538 = smul.addr %s537, 8
        %s539 = scalar_lea.vmem %s7, %s538
        %p540 = scmp.lt.s32.totalorder %s30, 3
        %s541 = scalar_select %p540, %s30, 3
        %s542 = scalar_lea.vmem %s8, %s541
        %p543 = scmp.lt.s32.totalorder %s30, 3
        %s544 = scalar_select %p543, %s30, 3
        %s545 = smul.addr %s544, 8
        %s546 = scalar_lea.vmem %s9, %s545
        %p547 = scmp.eq.s32.totalorder %s30, 0
        // Predicated region
        $region65: #{tpu_custom_call.1} parent=63 // pred_check
          %p548 = pneg %p547
        $region66: #{tpu_custom_call.1} parent=63 // pred_check_branch
          %550 = sbr.rel (%p548) target = $region68
        $region67: #{tpu_custom_call.1} parent=63 // pred_region
          %v551 = vld [vmem:[%s10] sm:$0x1]
          %v553 = vlaneseq
          %v554 = vshrl.u32 %v553, 7
          %v555 = vsub.s32 0, %v554
          %v556 = vrot.slane %v551, %v555
          %vm558 = vcmask 261120
          %559 = vst.msk [vmem:[%s506] sm:$0xff] %vm558, %v556
        $region68: #{tpu_custom_call.1} parent=63 // pred_fallthru
          _
        %v560 = vld [vmem:[%s510] sm:$0xff]
        %v561 = vld [vmem:[%s514] sm:$0xff]
        %v562 = vld [vmem:[%s518] sm:$0xff]
        %v563 = vld [vmem:[%s523] sm:$0xff]
        %v564 = vld [vmem:[%s523 + $0x8] sm:$0xff]
        %v565 = vld [vmem:[%s523 + $0x10] sm:$0xff]
        %v566 = vld [vmem:[%s523 + $0x18] sm:$0xff]
        %v567 = vld [vmem:[%s531] sm:$0xff]
        %v568 = vld [vmem:[%s531 + $0x8] sm:$0xff]
        %v569 = vld [vmem:[%s531 + $0x10] sm:$0xff]
        %v570 = vld [vmem:[%s531 + $0x18] sm:$0xff]
        %v571 = vld [vmem:[%s539] sm:$0xff]
        %v572 = vld [vmem:[%s539 + $0x8] sm:$0xff]
        %v573 = vld [vmem:[%s539 + $0x10] sm:$0xff]
        %v574 = vld [vmem:[%s539 + $0x18] sm:$0xff]
        %v575 = vld [vmem:[%s546] sm:$0xff]
        %v576 = vld [vmem:[%s526] sm:$0x1]
        %v578 = vlaneseq
        %v579 = vshrl.u32 %v578, 7
        %v580 = vsub.s32 0, %v579
        %v581 = vrot.slane %v576, %v580
        %vm583 = vcmask 261120
        %v585 = vsel %vm583, %v560, 0
        %587 = vmatprep.subr.mxu0 0.0
        %588 = vmatpush1.msra.mxu0 0.0
        %589 = vmatprep.subr.mxu0 0.0
        %590 = vmatpush1.msra.mxu0 0.0
        %591 = vmatprep.subr.mxu0 0.0
        %592 = vmatpush1.msra.mxu0 0.0
        %593 = vmatprep.subr.mxu0 0.0
        %594 = vmatpush1.msra.mxu0 0.0
        %595 = vmatprep.subr.mxu0 0.0
        %596 = vmatpush1.msra.mxu0 0.0
        %597 = vmatprep.subr.mxu0 0.0
        %598 = vmatpush1.msra.mxu0 0.0
        %599 = vmatprep.subr.mxu0 0.0
        %600 = vmatpush1.msra.mxu0 0.0
        %601 = vmatprep.subr.mxu0 0.0
        %602 = vmatpush1.msra.mxu0 0.0
        %603 = vmatprep.subr.mxu0 0.0
        %604 = vmatpush1.msra.mxu0 0.0
        %605 = vmatprep.subr.mxu0 0.0
        %606 = vmatpush1.msra.mxu0 0.0
        %607 = vmatprep.subr.mxu0 0.0
        %608 = vmatpush1.msra.mxu0 0.0
        %609 = vmatprep.subr.mxu0 0.0
        %610 = vmatpush1.msra.mxu0 0.0
        %611 = vmatprep.subr.mxu0 0.0
        %612 = vmatpush1.msra.mxu0 %v566
        %613 = vmatprep.subr.mxu0 0.0
        %614 = vmatpush1.msra.mxu0 %v565
        %615 = vmatprep.subr.mxu0 0.0
        %616 = vmatpush1.msra.mxu0 %v564
        %617 = vmatprep.subr.mxu0 0.0
        %618 = vmatpush1.msra.mxu0 %v563
        %619 = vmatprep.subr.mxu0 0.0
        %620 = vmatpush2.msra.mxu0 0.0
        %621 = vmatprep.subr.mxu0 0.0
        %622 = vmatpush2.msra.mxu0 0.0
        %623 = vmatprep.subr.mxu0 0.0
        %624 = vmatpush2.msra.mxu0 0.0
        %625 = vmatprep.subr.mxu0 0.0
        %626 = vmatpush2.msra.mxu0 0.0
        %627 = vmatprep.subr.mxu0 0.0
        %628 = vmatpush2.msra.mxu0 0.0
        %629 = vmatprep.subr.mxu0 0.0
        %630 = vmatpush2.msra.mxu0 0.0
        %631 = vmatprep.subr.mxu0 0.0
        %632 = vmatpush2.msra.mxu0 0.0
        %633 = vmatprep.subr.mxu0 0.0
        %634 = vmatpush2.msra.mxu0 0.0
        %635 = vmatprep.subr.mxu0 0.0
        %636 = vmatpush2.msra.mxu0 0.0
        %637 = vmatprep.subr.mxu0 0.0
        %638 = vmatpush2.msra.mxu0 0.0
        %639 = vmatprep.subr.mxu0 0.0
        %640 = vmatpush2.msra.mxu0 0.0
        %641 = vmatprep.subr.mxu0 0.0
        %642 = vmatpush2.msra.mxu0 0.0
        %643 = vmatprep.subr.mxu0 0.0
        %644 = vmatpush2.msra.mxu0 0.0
        %645 = vmatprep.subr.mxu0 0.0
        %646 = vmatpush2.msra.mxu0 0.0
        %647 = vmatprep.subr.mxu0 0.0
        %648 = vmatpush2.msra.mxu0 0.0
        %649 = vmatprep.subr.mxu0 0.0
        %650 = vmatpush2.msra.mxu0 0.0
        %651 = vmatprep.mubr.f32.mxu0 0.0
        %652 = vmatmul.mubr.f32.gmra.mxu0 %v585
        %v653 = vpop.f32.mrf.mxu0
        %v654 = vadd.f32 %v581, %v653
        %v655 = vpop.f32.mrf.mxu0
        %656 = vdwg.mxu0
        %v657 = vld [vmem:[%s534] sm:$0x1]
        %v659 = vlaneseq
        %v660 = vshrl.u32 %v659, 7
        %v661 = vsub.s32 0, %v660
        %v662 = vrot.slane %v657, %v661
        %v665 = vsel %vm583, %v561, 0
        %667 = vmatprep.subr.mxu0 0.0
        %668 = vmatpush1.msra.mxu0 0.0
        %669 = vmatprep.subr.mxu0 0.0
        %670 = vmatpush1.msra.mxu0 0.0
        %671 = vmatprep.subr.mxu0 0.0
        %672 = vmatpush1.msra.mxu0 0.0
        %673 = vmatprep.subr.mxu0 0.0
        %674 = vmatpush1.msra.mxu0 0.0
        %675 = vmatprep.subr.mxu0 0.0
        %676 = vmatpush1.msra.mxu0 0.0
        %677 = vmatprep.subr.mxu0 0.0
        %678 = vmatpush1.msra.mxu0 0.0
        %679 = vmatprep.subr.mxu0 0.0
        %680 = vmatpush1.msra.mxu0 0.0
        %681 = vmatprep.subr.mxu0 0.0
        %682 = vmatpush1.msra.mxu0 0.0
        %683 = vmatprep.subr.mxu0 0.0
        %684 = vmatpush1.msra.mxu0 0.0
        %685 = vmatprep.subr.mxu0 0.0
        %686 = vmatpush1.msra.mxu0 0.0
        %687 = vmatprep.subr.mxu0 0.0
        %688 = vmatpush1.msra.mxu0 0.0
        %689 = vmatprep.subr.mxu0 0.0
        %690 = vmatpush1.msra.mxu0 0.0
        %691 = vmatprep.subr.mxu0 0.0
        %692 = vmatpush1.msra.mxu0 %v570
        %693 = vmatprep.subr.mxu0 0.0
        %694 = vmatpush1.msra.mxu0 %v569
        %695 = vmatprep.subr.mxu0 0.0
        %696 = vmatpush1.msra.mxu0 %v568
        %697 = vmatprep.subr.mxu0 0.0
        %698 = vmatpush1.msra.mxu0 %v567
        %699 = vmatprep.subr.mxu0 0.0
        %700 = vmatpush2.msra.mxu0 0.0
        %701 = vmatprep.subr.mxu0 0.0
        %702 = vmatpush2.msra.mxu0 0.0
        %703 = vmatprep.subr.mxu0 0.0
        %704 = vmatpush2.msra.mxu0 0.0
        %705 = vmatprep.subr.mxu0 0.0
        %706 = vmatpush2.msra.mxu0 0.0
        %707 = vmatprep.subr.mxu0 0.0
        %708 = vmatpush2.msra.mxu0 0.0
        %709 = vmatprep.subr.mxu0 0.0
        %710 = vmatpush2.msra.mxu0 0.0
        %711 = vmatprep.subr.mxu0 0.0
        %712 = vmatpush2.msra.mxu0 0.0
        %713 = vmatprep.subr.mxu0 0.0
        %714 = vmatpush2.msra.mxu0 0.0
        %715 = vmatprep.subr.mxu0 0.0
        %716 = vmatpush2.msra.mxu0 0.0
        %717 = vmatprep.subr.mxu0 0.0
        %718 = vmatpush2.msra.mxu0 0.0
        %719 = vmatprep.subr.mxu0 0.0
        %720 = vmatpush2.msra.mxu0 0.0
        %721 = vmatprep.subr.mxu0 0.0
        %722 = vmatpush2.msra.mxu0 0.0
        %723 = vmatprep.subr.mxu0 0.0
        %724 = vmatpush2.msra.mxu0 0.0
        %725 = vmatprep.subr.mxu0 0.0
        %726 = vmatpush2.msra.mxu0 0.0
        %727 = vmatprep.subr.mxu0 0.0
        %728 = vmatpush2.msra.mxu0 0.0
        %729 = vmatprep.subr.mxu0 0.0
        %730 = vmatpush2.msra.mxu0 0.0
        %731 = vmatprep.mubr.f32.mxu0 0.0
        %732 = vmatmul.mubr.f32.gmra.mxu0 %v665
        %v733 = vpop.f32.mrf.mxu0
        %v734 = vadd.f32 %v662, %v733
        %v735 = vpop.f32.mrf.mxu0
        %736 = vdwg.mxu0
        %v737 = vld [vmem:[%s542] sm:$0x1]
        %v739 = vlaneseq
        %v740 = vshrl.u32 %v739, 7
        %v741 = vsub.s32 0, %v740
        %v742 = vrot.slane %v737, %v741
        %v745 = vsel %vm583, %v562, 0
        %747 = vmatprep.subr.mxu0 0.0
        %748 = vmatpush1.msra.mxu0 0.0
        %749 = vmatprep.subr.mxu0 0.0
        %750 = vmatpush1.msra.mxu0 0.0
        %751 = vmatprep.subr.mxu0 0.0
        %752 = vmatpush1.msra.mxu0 0.0
        %753 = vmatprep.subr.mxu0 0.0
        %754 = vmatpush1.msra.mxu0 0.0
        %755 = vmatprep.subr.mxu0 0.0
        %756 = vmatpush1.msra.mxu0 0.0
        %757 = vmatprep.subr.mxu0 0.0
        %758 = vmatpush1.msra.mxu0 0.0
        %759 = vmatprep.subr.mxu0 0.0
        %760 = vmatpush1.msra.mxu0 0.0
        %761 = vmatprep.subr.mxu0 0.0
        %762 = vmatpush1.msra.mxu0 0.0
        %763 = vmatprep.subr.mxu0 0.0
        %764 = vmatpush1.msra.mxu0 0.0
        %765 = vmatprep.subr.mxu0 0.0
        %766 = vmatpush1.msra.mxu0 0.0
        %767 = vmatprep.subr.mxu0 0.0
        %768 = vmatpush1.msra.mxu0 0.0
        %769 = vmatprep.subr.mxu0 0.0
        %770 = vmatpush1.msra.mxu0 0.0
        %771 = vmatprep.subr.mxu0 0.0
        %772 = vmatpush1.msra.mxu0 %v574
        %773 = vmatprep.subr.mxu0 0.0
        %774 = vmatpush1.msra.mxu0 %v573
        %775 = vmatprep.subr.mxu0 0.0
        %776 = vmatpush1.msra.mxu0 %v572
        %777 = vmatprep.subr.mxu0 0.0
        %778 = vmatpush1.msra.mxu0 %v571
        %779 = vmatprep.subr.mxu0 0.0
        %780 = vmatpush2.msra.mxu0 0.0
        %781 = vmatprep.subr.mxu0 0.0
        %782 = vmatpush2.msra.mxu0 0.0
        %783 = vmatprep.subr.mxu0 0.0
        %784 = vmatpush2.msra.mxu0 0.0
        %785 = vmatprep.subr.mxu0 0.0
        %786 = vmatpush2.msra.mxu0 0.0
        %787 = vmatprep.subr.mxu0 0.0
        %788 = vmatpush2.msra.mxu0 0.0
        %789 = vmatprep.subr.mxu0 0.0
        %790 = vmatpush2.msra.mxu0 0.0
        %791 = vmatprep.subr.mxu0 0.0
        %792 = vmatpush2.msra.mxu0 0.0
        %793 = vmatprep.subr.mxu0 0.0
        %794 = vmatpush2.msra.mxu0 0.0
        %795 = vmatprep.subr.mxu0 0.0
        %796 = vmatpush2.msra.mxu0 0.0
        %797 = vmatprep.subr.mxu0 0.0
        %798 = vmatpush2.msra.mxu0 0.0
        %799 = vmatprep.subr.mxu0 0.0
        %800 = vmatpush2.msra.mxu0 0.0
        %801 = vmatprep.subr.mxu0 0.0
        %802 = vmatpush2.msra.mxu0 0.0
        %803 = vmatprep.subr.mxu0 0.0
        %804 = vmatpush2.msra.mxu0 0.0
        %805 = vmatprep.subr.mxu0 0.0
        %806 = vmatpush2.msra.mxu0 0.0
        %807 = vmatprep.subr.mxu0 0.0
        %808 = vmatpush2.msra.mxu0 0.0
        %809 = vmatprep.subr.mxu0 0.0
        %810 = vmatpush2.msra.mxu0 0.0
        %811 = vmatprep.mubr.f32.mxu0 0.0
        %812 = vmatmul.mubr.f32.gmra.mxu0 %v745
        %v813 = vpop.f32.mrf.mxu0
        %v814 = vadd.f32 %v742, %v813
        %v815 = vpop.f32.mrf.mxu0
        %816 = vdwg.mxu0
        %v817 = vmul.f32 %v654, 0.35355338
        %vm818 = vcmask 64512
        %v820 = vsel %vm818, %v817, 0
        %v823 = vsel %vm818, %v734, 0
        %825 = vmatprep.subr.mxu0 0.0
        %826 = vmatpush1.xpose.msra.mxu0 0.0
        %827 = vmatprep.subr.mxu0 0.0
        %828 = vmatpush1.xpose.msra.mxu0 0.0
        %829 = vmatprep.subr.mxu0 0.0
        %830 = vmatpush1.xpose.msra.mxu0 0.0
        %831 = vmatprep.subr.mxu0 0.0
        %832 = vmatpush1.xpose.msra.mxu0 0.0
        %833 = vmatprep.subr.mxu0 0.0
        %834 = vmatpush1.xpose.msra.mxu0 0.0
        %835 = vmatprep.subr.mxu0 0.0
        %836 = vmatpush1.xpose.msra.mxu0 0.0
        %837 = vmatprep.subr.mxu0 0.0
        %838 = vmatpush1.xpose.msra.mxu0 0.0
        %839 = vmatprep.subr.mxu0 0.0
        %840 = vmatpush1.xpose.msra.mxu0 0.0
        %841 = vmatprep.subr.mxu0 0.0
        %842 = vmatpush1.xpose.msra.mxu0 0.0
        %843 = vmatprep.subr.mxu0 0.0
        %844 = vmatpush1.xpose.msra.mxu0 0.0
        %845 = vmatprep.subr.mxu0 0.0
        %846 = vmatpush1.xpose.msra.mxu0 0.0
        %847 = vmatprep.subr.mxu0 0.0
        %848 = vmatpush1.xpose.msra.mxu0 0.0
        %849 = vmatprep.subr.mxu0 0.0
        %850 = vmatpush1.xpose.msra.mxu0 0.0
        %851 = vmatprep.subr.mxu0 0.0
        %852 = vmatpush1.xpose.msra.mxu0 0.0
        %853 = vmatprep.subr.mxu0 0.0
        %854 = vmatpush1.xpose.msra.mxu0 0.0
        %855 = vmatprep.subr.mxu0 0.0
        %856 = vmatpush1.xpose.msra.mxu0 %v823
        %857 = vmatprep.subr.mxu0 0.0
        %858 = vmatpush2.xpose.msra.mxu0 0.0
        %859 = vmatprep.subr.mxu0 0.0
        %860 = vmatpush2.xpose.msra.mxu0 0.0
        %861 = vmatprep.subr.mxu0 0.0
        %862 = vmatpush2.xpose.msra.mxu0 0.0
        %863 = vmatprep.subr.mxu0 0.0
        %864 = vmatpush2.xpose.msra.mxu0 0.0
        %865 = vmatprep.subr.mxu0 0.0
        %866 = vmatpush2.xpose.msra.mxu0 0.0
        %867 = vmatprep.subr.mxu0 0.0
        %868 = vmatpush2.xpose.msra.mxu0 0.0
        %869 = vmatprep.subr.mxu0 0.0
        %870 = vmatpush2.xpose.msra.mxu0 0.0
        %871 = vmatprep.subr.mxu0 0.0
        %872 = vmatpush2.xpose.msra.mxu0 0.0
        %873 = vmatprep.subr.mxu0 0.0
        %874 = vmatpush2.xpose.msra.mxu0 0.0
        %875 = vmatprep.subr.mxu0 0.0
        %876 = vmatpush2.xpose.msra.mxu0 0.0
        %877 = vmatprep.subr.mxu0 0.0
        %878 = vmatpush2.xpose.msra.mxu0 0.0
        %879 = vmatprep.subr.mxu0 0.0
        %880 = vmatpush2.xpose.msra.mxu0 0.0
        %881 = vmatprep.subr.mxu0 0.0
        %882 = vmatpush2.xpose.msra.mxu0 0.0
        %883 = vmatprep.subr.mxu0 0.0
        %884 = vmatpush2.xpose.msra.mxu0 0.0
        %885 = vmatprep.subr.mxu0 0.0
        %886 = vmatpush2.xpose.msra.mxu0 0.0
        %887 = vmatprep.subr.mxu0 0.0
        %888 = vmatpush2.xpose.msra.mxu0 0.0
        %889 = vmatprep.mubr.f32.mxu0 0.0
        %890 = vmatmul.mubr.f32.gmra.mxu0 %v820
        %v891 = vpop.f32.mrf.mxu0
        %v892 = vadd.f32 0.0, %v891
        %v893 = vpop.f32.mrf.mxu0
        %894 = vdwg.mxu0
        %v895 = vsel %vm818, %v892, -inf
        %896 = vmax.xlane.f32.xlu0 %v895
        %v897 = vpop.xlane.xlu0 %896
        %v898 = vsub.f32 %v892, %v897
        %v899 = vmul.f32 %v898, 1.442695
        %v900 = vpow.pop %v899
        %v901 = vsel %vm818, %v900, 0.0
        %902 = vadd.xlane.f32.xlu0 %v901
        %v903 = vpop.xlane.xlu0 %902
        %v904 = vrcp.pop %v903
        %v905 = vmul.f32 %v900, %v904
        %v907 = vsel %vm818, %v905, 0
        %909 = vmatprep.subr.mxu0 0.0
        %910 = vmatpush1.msra.mxu0 0.0
        %911 = vmatprep.subr.mxu0 0.0
        %912 = vmatpush1.msra.mxu0 0.0
        %913 = vmatprep.subr.mxu0 0.0
        %914 = vmatpush1.msra.mxu0 0.0
        %915 = vmatprep.subr.mxu0 0.0
        %916 = vmatpush1.msra.mxu0 0.0
        %917 = vmatprep.subr.mxu0 0.0
        %918 = vmatpush1.msra.mxu0 0.0
        %919 = vmatprep.subr.mxu0 0.0
        %920 = vmatpush1.msra.mxu0 0.0
        %921 = vmatprep.subr.mxu0 0.0
        %922 = vmatpush1.msra.mxu0 0.0
        %923 = vmatprep.subr.mxu0 0.0
        %924 = vmatpush1.msra.mxu0 0.0
        %925 = vmatprep.subr.mxu0 0.0
        %926 = vmatpush1.msra.mxu0 0.0
        %927 = vmatprep.subr.mxu0 0.0
        %928 = vmatpush1.msra.mxu0 0.0
        %929 = vmatprep.subr.mxu0 0.0
        %930 = vmatpush1.msra.mxu0 0.0
        %931 = vmatprep.subr.mxu0 0.0
        %932 = vmatpush1.msra.mxu0 0.0
        %933 = vmatprep.subr.mxu0 0.0
        %934 = vmatpush1.msra.mxu0 0.0
        %935 = vmatprep.subr.mxu0 0.0
        %936 = vmatpush1.msra.mxu0 0.0
        %937 = vmatprep.subr.mxu0 0.0
        %938 = vmatpush1.msra.mxu0 0.0
        %939 = vmatprep.subr.mxu0 0.0
        %940 = vmatpush1.msra.mxu0 %v814
        %941 = vmatprep.subr.mxu0 0.0
        %942 = vmatpush2.msra.mxu0 0.0
        %943 = vmatprep.subr.mxu0 0.0
        %944 = vmatpush2.msra.mxu0 0.0
        %945 = vmatprep.subr.mxu0 0.0
        %946 = vmatpush2.msra.mxu0 0.0
        %947 = vmatprep.subr.mxu0 0.0
        %948 = vmatpush2.msra.mxu0 0.0
        %949 = vmatprep.subr.mxu0 0.0
        %950 = vmatpush2.msra.mxu0 0.0
        %951 = vmatprep.subr.mxu0 0.0
        %952 = vmatpush2.msra.mxu0 0.0
        %953 = vmatprep.subr.mxu0 0.0
        %954 = vmatpush2.msra.mxu0 0.0
        %955 = vmatprep.subr.mxu0 0.0
        %956 = vmatpush2.msra.mxu0 0.0
        %957 = vmatprep.subr.mxu0 0.0
        %958 = vmatpush2.msra.mxu0 0.0
        %959 = vmatprep.subr.mxu0 0.0
        %960 = vmatpush2.msra.mxu0 0.0
        %961 = vmatprep.subr.mxu0 0.0
        %962 = vmatpush2.msra.mxu0 0.0
        %963 = vmatprep.subr.mxu0 0.0
        %964 = vmatpush2.msra.mxu0 0.0
        %965 = vmatprep.subr.mxu0 0.0
        %966 = vmatpush2.msra.mxu0 0.0
        %967 = vmatprep.subr.mxu0 0.0
        %968 = vmatpush2.msra.mxu0 0.0
        %969 = vmatprep.subr.mxu0 0.0
        %970 = vmatpush2.msra.mxu0 0.0
        %971 = vmatprep.subr.mxu0 0.0
        %972 = vmatpush2.msra.mxu0 0.0
        %973 = vmatprep.mubr.f32.mxu0 0.0
        %974 = vmatmul.mubr.f32.gmra.mxu0 %v907
        %v975 = vpop.f32.mrf.mxu0
        %v976 = vadd.f32 0.0, %v975
        %v977 = vpop.f32.mrf.mxu0
        %978 = vdwg.mxu0
        %v979 = vld [vmem:[%s506] sm:$0xff]
        %v981 = vsel %vm818, %v976, 0
        %983 = vmatprep.subr.mxu0 0.0
        %984 = vmatpush1.msra.mxu0 0.0
        %985 = vmatprep.subr.mxu0 0.0
        %986 = vmatpush1.msra.mxu0 0.0
        %987 = vmatprep.subr.mxu0 0.0
        %988 = vmatpush1.msra.mxu0 0.0
        %989 = vmatprep.subr.mxu0 0.0
        %990 = vmatpush1.msra.mxu0 0.0
        %991 = vmatprep.subr.mxu0 0.0
        %992 = vmatpush1.msra.mxu0 0.0
        %993 = vmatprep.subr.mxu0 0.0
        %994 = vmatpush1.msra.mxu0 0.0
        %995 = vmatprep.subr.mxu0 0.0
        %996 = vmatpush1.msra.mxu0 0.0
        %997 = vmatprep.subr.mxu0 0.0
        %998 = vmatpush1.msra.mxu0 0.0
        %999 = vmatprep.subr.mxu0 0.0
        %1000 = vmatpush1.msra.mxu0 0.0
        %1001 = vmatprep.subr.mxu0 0.0
        %1002 = vmatpush1.msra.mxu0 0.0
        %1003 = vmatprep.subr.mxu0 0.0
        %1004 = vmatpush1.msra.mxu0 0.0
        %1005 = vmatprep.subr.mxu0 0.0
        %1006 = vmatpush1.msra.mxu0 0.0
        %1007 = vmatprep.subr.mxu0 0.0
        %1008 = vmatpush1.msra.mxu0 0.0
        %1009 = vmatprep.subr.mxu0 0.0
        %1010 = vmatpush1.msra.mxu0 0.0
        %1011 = vmatprep.subr.mxu0 0.0
        %1012 = vmatpush1.msra.mxu0 0.0
        %1013 = vmatprep.subr.mxu0 0.0
        %1014 = vmatpush1.msra.mxu0 %v575
        %1015 = vmatprep.subr.mxu0 0.0
        %1016 = vmatpush2.msra.mxu0 0.0
        %1017 = vmatprep.subr.mxu0 0.0
        %1018 = vmatpush2.msra.mxu0 0.0
        %1019 = vmatprep.subr.mxu0 0.0
        %1020 = vmatpush2.msra.mxu0 0.0
        %1021 = vmatprep.subr.mxu0 0.0
        %1022 = vmatpush2.msra.mxu0 0.0
        %1023 = vmatprep.subr.mxu0 0.0
        %1024 = vmatpush2.msra.mxu0 0.0
        %1025 = vmatprep.subr.mxu0 0.0
        %1026 = vmatpush2.msra.mxu0 0.0
        %1027 = vmatprep.subr.mxu0 0.0
        %1028 = vmatpush2.msra.mxu0 0.0
        %1029 = vmatprep.subr.mxu0 0.0
        %1030 = vmatpush2.msra.mxu0 0.0
        %1031 = vmatprep.subr.mxu0 0.0
        %1032 = vmatpush2.msra.mxu0 0.0
        %1033 = vmatprep.subr.mxu0 0.0
        %1034 = vmatpush2.msra.mxu0 0.0
        %1035 = vmatprep.subr.mxu0 0.0
        %1036 = vmatpush2.msra.mxu0 0.0
        %1037 = vmatprep.subr.mxu0 0.0
        %1038 = vmatpush2.msra.mxu0 0.0
        %1039 = vmatprep.subr.mxu0 0.0
        %1040 = vmatpush2.msra.mxu0 0.0
        %1041 = vmatprep.subr.mxu0 0.0
        %1042 = vmatpush2.msra.mxu0 0.0
        %1043 = vmatprep.subr.mxu0 0.0
        %1044 = vmatpush2.msra.mxu0 0.0
        %1045 = vmatprep.subr.mxu0 0.0
        %1046 = vmatpush2.msra.mxu0 0.0
        %1047 = vmatprep.mubr.f32.mxu0 0.0
        %1048 = vmatmul.mubr.f32.gmra.mxu0 %v981
        %v1049 = vpop.f32.mrf.mxu0
        %v1050 = vadd.f32 0.0, %v1049
        %v1051 = vpop.f32.mrf.mxu0
        %1052 = vdwg.mxu0
        %v1053 = vadd.f32 %v979, %v1050
        %1054 = vst.msk [vmem:[%s506] sm:$0xff] %vm583, %v1053
        %s1055 = sand.u32 %s326, 1
        %s1056 = scalar_lea.sflag [#allocation3], %s1055
        %s1057 = sand.u32 %s326, 1
        %s1058 = smul.addr %s1057, 8
        %s1059 = scalar_lea.vmem [#allocation2], %s1058
        // Predicated region
        $region69: #{tpu_custom_call.1} parent=63 // pred_check
          %p1060 = pneg %p336
        $region70: #{tpu_custom_call.1} parent=63 // pred_check_branch
          %1062 = sbr.rel (%p1060) target = $region72
        $region71: #{tpu_custom_call.1} parent=63 // pred_region
          %s1064 = ssub.s32 128, 128
          %1065 = vsyncadd %s1056, %s1064
          %s1066 = smul.addr %s29, 128
          %s1067 = scalar_lea.hbm %s11, %s1066
          %s1069 = sshll.u32 %s1059, 4
          %s1070 = int_to_ptr.vmem [resolvable:$true] %s1069
          %1072 = dma.vmem_to_hbm [thread:$0]  %s1070, 128, %s1067, %s1056
        $region72: #{tpu_custom_call.1} parent=63 // pred_fallthru
          _
      $region64: #{tpu_custom_call.1} parent=5 // pred_fallthru
        _
      %p1073 = scmp.le.s32.totalorder 2, %s20
      // Predicated region
      $region73: #{tpu_custom_call.1} parent=5 // pred_check
        %p1074 = pneg %p1073
      $region74: #{tpu_custom_call.1} parent=5 // pred_check_branch
        %1076 = sbr.rel (%p1074) target = $region76
      $region75: #{tpu_custom_call.1} parent=5 // pred_region
        %s1077 = ssub.s32 %s20, 2
        // Predicated region
        $region77: #{tpu_custom_call.1} parent=75 // pred_check
          %p1078 = pneg %p342
        $region78: #{tpu_custom_call.1} parent=75 // pred_check_branch
          %1080 = sbr.rel (%p1078) target = $region80
        $region79: #{tpu_custom_call.1} parent=75 // pred_region
          %s1081 = sand.u32 %s327, 1
          %s1082 = scalar_lea.sflag [#allocation3], %s1081
          %s1083 = sand.u32 %s327, 1
          %s1084 = smul.addr %s1083, 8
          %s1085 = scalar_lea.vmem [#allocation2], %s1084
          %1086 = dma.done %s1082, 128
        $region80: #{tpu_custom_call.1} parent=75 // pred_fallthru
          _
      $region76: #{tpu_custom_call.1} parent=5 // pred_fallthru
        _
    $region6: #{tpu_custom_call.1} parent=1 // loop_footer
      %s24 = sadd.s32 1, %s20
    $region7: #{tpu_custom_call.1} parent=1 // loop_footer_branch
      %19 = sbr.rel target = $region3
    $region8: #{tpu_custom_call.1} parent=1 // loop_exit
      _
    %1087 = vsyncpa [#allocation3], 1
    %s1088 = scalar_lea.sflag [#allocation3], 1
    %1089 = vsyncpa %s1088, 1

</llo_original>
